<compile_context>
chip_gen: v7x
topology: tpu7x:2x2x1
jax: 0.10.0
libtpu: 0.0.40
codegen_flags: <defaults>
</compile_context>

<pallas_src>
import functools

import jax
import jax.numpy as jnp
from jax.experimental import pallas as pl
from jax.experimental.pallas import tpu as pltpu

LANE = 128     # hidden (lane) dim padded to a multiple of this
SUBLANE = 8    # batch (sublane) tiles kept 8-aligned


def _round_up(n, m):
    return ((n + m - 1) // m) * m


def _default_num_batch_tiles():
    """>=2 parallel batch tiles on v7x (2 TensorCores/chip); 1 tile on v5e/v6e."""
    try:
        kind = jax.devices()[0].device_kind.lower()
    except Exception:
        kind = ""
    return 2 if ("v7" in kind or "7x" in kind) else 1


def dqn_kernel(x_ref, w1_ref, b1_ref, w2_ref, b2_ref, w3_ref, b3_ref, o_ref):
    """Fused Linear->ReLU->Linear->ReLU->Linear on one (TB, in_size) batch tile."""
    x = x_ref[...].astype(jnp.bfloat16)                                  # f32 HBM -> bf16 MXU operand
    h1 = jnp.dot(x, w1_ref[...], preferred_element_type=jnp.float32)     # (TB, HID_P) f32 acc
    h1 = jnp.maximum(h1 + b1_ref[...], 0.0).astype(jnp.bfloat16)         # bias/ReLU in f32
    h2 = jnp.dot(h1, w2_ref[...], preferred_element_type=jnp.float32)
    h2 = jnp.maximum(h2 + b2_ref[...], 0.0).astype(jnp.bfloat16)
    o_ref[...] = jnp.dot(h2, w3_ref[...], preferred_element_type=jnp.float32) + b3_ref[...]


def prepare_dqn_params(w1, b1, w2, b2, w3, b3):
    """Pad hidden dim to 128 lanes and cast weights to bf16 ONCE (outside hot path).

    Weights are stored [in, out] so the kernel computes y = x @ W + b on the MXU.
    Zero padding keeps the math exact: padded weight rows/cols and bias entries are 0,
    so padded hidden columns are 0 after ReLU and never affect real outputs.
    """
    in_size, hid = w1.shape
    out_size = w3.shape[1]
    hid_p = _round_up(hid, LANE)

    def pad2(a, rows, cols, dtype):
        a = jnp.asarray(a, dtype).reshape(-1, a.shape[-1]) if a.ndim == 1 else jnp.asarray(a, dtype)
        return jnp.pad(a, ((0, rows - a.shape[0]), (0, cols - a.shape[1])))

    w1_p = pad2(w1, in_size, hid_p, jnp.bfloat16)        # (in,   hid_p) — true (narrow) K
    w2_p = pad2(w2, hid_p, hid_p, jnp.bfloat16)          # (hid_p, hid_p)
    w3_p = pad2(w3, hid_p, out_size, jnp.bfloat16)       # (hid_p, out)  — true (narrow) N
    b1_p = pad2(jnp.reshape(b1, (1, -1)), 1, hid_p, jnp.float32)
    b2_p = pad2(jnp.reshape(b2, (1, -1)), 1, hid_p, jnp.float32)
    b3_p = jnp.reshape(b3, (1, -1)).astype(jnp.float32)  # (1, out) — unpadded
    return (w1_p, b1_p, w2_p, b2_p, w3_p, b3_p)


@functools.partial(jax.jit, static_argnames=("num_tiles", "max_tb"))
def _dqn_forward_impl(x, params, num_tiles, max_tb):
    w1_p, b1_p, w2_p, b2_p, w3_p, b3_p = params
    B, in_size = x.shape
    out_size = w3_p.shape[1]

    # Batch tile: num_tiles parallel tiles (8-aligned), capped so VMEM stays tiny.
    tb = min(max_tb, _round_up(pl.cdiv(B, num_tiles), SUBLANE))
    b_p = _round_up(B, tb)
    grid = (b_p // tb,)

    # Only row padding of x (if B isn't tile-aligned); feature dim stays at in_size.
    x_p = x if b_p == B else jnp.pad(x, ((0, b_p - B), (0, 0)))

    # Constant index maps -> weights/biases fetched once, VMEM-resident across the grid.
    resident = lambda a: pl.BlockSpec(a.shape, lambda i: (0, 0))

    out_full = pl.pallas_call(
        dqn_kernel,
        out_shape=jax.ShapeDtypeStruct((b_p, out_size), jnp.float32),
        grid_spec=pltpu.PrefetchScalarGridSpec(
            num_scalar_prefetch=0,
            grid=grid,
            in_specs=[
                pl.BlockSpec((tb, in_size), lambda i: (i, 0)),   # x: tiled over batch only
                resident(w1_p), resident(b1_p),
                resident(w2_p), resident(b2_p),
                resident(w3_p), resident(b3_p),
            ],
            out_specs=pl.BlockSpec((tb, out_size), lambda i: (i, 0)),
        ),
        compiler_params=pltpu.CompilerParams(
            dimension_semantics=("parallel",)),
    )(x_p, w1_p, b1_p, w2_p, b2_p, w3_p, b3_p)

    return out_full if b_p == B else out_full[:B]


def dqn_forward(x, params, num_tiles=None, max_tb=1024):
    """Hot-path forward: x is [batch, input_size] f32; params from prepare_dqn_params()."""
    if num_tiles is None:
        num_tiles = _default_num_batch_tiles()
    return _dqn_forward_impl(x, params, num_tiles, max_tb)


def init_linear(key, in_features, out_features):
    """Deterministic init mimicking nn.Linear's uniform(-1/sqrt(in), 1/sqrt(in)).

    Weights stored as [in, out] (transpose of PyTorch's [out, in])."""
    kw, kb = jax.random.split(key)
    bound = 1.0 / (in_features ** 0.5)
    w = jax.random.uniform(kw, (in_features, out_features), jnp.float32, -bound, bound)
    b = jax.random.uniform(kb, (1, out_features), jnp.float32, -bound, bound)
    return w, b


if __name__ == "__main__":
    # Small shapes consistent with DQNNet: x [batch, input_size], default hidden_size=100.
    batch, input_size, hidden_size, output_size = 50, 16, 100, 4

    key = jax.random.PRNGKey(0)
    kx, k1, k2, k3 = jax.random.split(key, 4)

    x = jax.random.normal(kx, (batch, input_size), jnp.float32)
    w1, b1 = init_linear(k1, input_size, hidden_size)
    w2, b2 = init_linear(k2, hidden_size, hidden_size)
    w3, b3 = init_linear(k3, hidden_size, output_size)

    params = prepare_dqn_params(w1, b1, w2, b2, w3, b3)   # pad + cast once, outside hot loop

    out = dqn_forward(x, params)
    out = jax.block_until_ready(out)
    assert out.shape == (batch, output_size)

    # Reference mirroring the kernel's precision (bf16 matmul operands, f32 accumulate).
    bf = lambda a: a.astype(jnp.bfloat16).astype(jnp.float32)
    h1 = jnp.maximum(bf(x) @ bf(w1) + b1, 0.0)
    h2 = jnp.maximum(bf(h1) @ bf(w2) + b2, 0.0)
    ref = bf(h2) @ bf(w3) + b3
    assert jnp.allclose(out, ref, atol=2e-3, rtol=2e-3)

    # Loose sanity check against the full-f32 PyTorch-equivalent forward.
    f1 = jnp.maximum(x @ w1 + b1, 0.0)
    f2 = jnp.maximum(f1 @ w2 + b2, 0.0)
    ref_f32 = f2 @ w3 + b3
    assert jnp.allclose(out, ref_f32, atol=5e-2, rtol=5e-2)

    # TODO(synk): DQNNet.play (epsilon-greedy env interaction) is host-side control
    # flow around this forward and is intentionally not implemented as a kernel.
    print("KERNEL_OK")
</pallas_src>

<mosaic_0001>
module attributes {stable_mosaic.version = 11 : i64} {
  func.func @dqn_kernel(%arg0: i32, %arg1: memref<56x16xf32, #tpu.memory_space<vmem>>, %arg2: memref<16x128xbf16, #tpu.memory_space<vmem>>, %arg3: memref<1x128xf32, #tpu.memory_space<vmem>>, %arg4: memref<128x128xbf16, #tpu.memory_space<vmem>>, %arg5: memref<1x128xf32, #tpu.memory_space<vmem>>, %arg6: memref<128x4xbf16, #tpu.memory_space<vmem>>, %arg7: memref<1x4xf32, #tpu.memory_space<vmem>>, %arg8: memref<56x4xf32, #tpu.memory_space<vmem>>) attributes {dimension_semantics = [#tpu.dimension_semantics<parallel>], iteration_bounds = array<i64: 1>, scalar_prefetch = 0 : i64, scratch_operands = 0 : i64, tpu.core_type = #tpu.core_type<tc>, window_params = [{transform_indices = @transform_0, window_bounds = array<i64: 56, 16>}, {pipeline_mode = #tpu.pipeline_mode<synchronous>, transform_indices = @transform_1, window_bounds = array<i64: 16, 128>}, {pipeline_mode = #tpu.pipeline_mode<synchronous>, transform_indices = @transform_2, window_bounds = array<i64: 1, 128>}, {pipeline_mode = #tpu.pipeline_mode<synchronous>, transform_indices = @transform_3, window_bounds = array<i64: 128, 128>}, {pipeline_mode = #tpu.pipeline_mode<synchronous>, transform_indices = @transform_4, window_bounds = array<i64: 1, 128>}, {pipeline_mode = #tpu.pipeline_mode<synchronous>, transform_indices = @transform_5, window_bounds = array<i64: 128, 4>}, {pipeline_mode = #tpu.pipeline_mode<synchronous>, transform_indices = @transform_6, window_bounds = array<i64: 1, 4>}, {transform_indices = @transform_7, window_bounds = array<i64: 56, 4>}]} {
    %c0 = arith.constant 0 : index
    %c0_0 = arith.constant 0 : index
    %0 = vector.load %arg1[%c0, %c0_0] : memref<56x16xf32, #tpu.memory_space<vmem>>, vector<56x16xf32>
    %1 = arith.truncf %0 : vector<56x16xf32> to vector<56x16xbf16>
    %c0_1 = arith.constant 0 : index
    %c0_2 = arith.constant 0 : index
    %2 = vector.load %arg2[%c0_1, %c0_2] : memref<16x128xbf16, #tpu.memory_space<vmem>>, vector<16x128xbf16>
    %cst = arith.constant dense<0.000000e+00> : vector<56x128xf32>
    %3 = tpu.matmul %1, %2, %cst {dimension_numbers = #tpu.dot_dimension_numbers<[1], [0], [0], [1], [0, 0, 1, 1], [], []>} : vector<56x16xbf16>, vector<16x128xbf16>, vector<56x128xf32> -> vector<56x128xf32>
    %c0_3 = arith.constant 0 : index
    %c0_4 = arith.constant 0 : index
    %4 = vector.load %arg3[%c0_3, %c0_4] : memref<1x128xf32, #tpu.memory_space<vmem>>, vector<1x128xf32>
    %5 = vector.broadcast %4 : vector<1x128xf32> to vector<56x128xf32>
    %6 = arith.addf %3, %5 : vector<56x128xf32>
    %cst_5 = arith.constant 0.000000e+00 : f32
    %7 = vector.broadcast %cst_5 : f32 to vector<56x128xf32>
    %8 = arith.maximumf %6, %7 : vector<56x128xf32>
    %9 = arith.truncf %8 : vector<56x128xf32> to vector<56x128xbf16>
    %c0_6 = arith.constant 0 : index
    %c0_7 = arith.constant 0 : index
    %10 = vector.load %arg4[%c0_6, %c0_7] : memref<128x128xbf16, #tpu.memory_space<vmem>>, vector<128x128xbf16>
    %cst_8 = arith.constant dense<0.000000e+00> : vector<56x128xf32>
    %11 = tpu.matmul %9, %10, %cst_8 {dimension_numbers = #tpu.dot_dimension_numbers<[1], [0], [0], [1], [0, 0, 1, 1], [], []>} : vector<56x128xbf16>, vector<128x128xbf16>, vector<56x128xf32> -> vector<56x128xf32>
    %c0_9 = arith.constant 0 : index
    %c0_10 = arith.constant 0 : index
    %12 = vector.load %arg5[%c0_9, %c0_10] : memref<1x128xf32, #tpu.memory_space<vmem>>, vector<1x128xf32>
    %13 = vector.broadcast %12 : vector<1x128xf32> to vector<56x128xf32>
    %14 = arith.addf %11, %13 : vector<56x128xf32>
    %cst_11 = arith.constant 0.000000e+00 : f32
    %15 = vector.broadcast %cst_11 : f32 to vector<56x128xf32>
    %16 = arith.maximumf %14, %15 : vector<56x128xf32>
    %17 = arith.truncf %16 : vector<56x128xf32> to vector<56x128xbf16>
    %c0_12 = arith.constant 0 : index
    %c0_13 = arith.constant 0 : index
    %18 = vector.load %arg6[%c0_12, %c0_13] : memref<128x4xbf16, #tpu.memory_space<vmem>>, vector<128x4xbf16>
    %cst_14 = arith.constant dense<0.000000e+00> : vector<56x4xf32>
    %19 = tpu.matmul %17, %18, %cst_14 {dimension_numbers = #tpu.dot_dimension_numbers<[1], [0], [0], [1], [0, 0, 1, 1], [], []>} : vector<56x128xbf16>, vector<128x4xbf16>, vector<56x4xf32> -> vector<56x4xf32>
    %c0_15 = arith.constant 0 : index
    %c0_16 = arith.constant 0 : index
    %20 = vector.load %arg7[%c0_15, %c0_16] : memref<1x4xf32, #tpu.memory_space<vmem>>, vector<1x4xf32>
    %21 = vector.broadcast %20 : vector<1x4xf32> to vector<56x4xf32>
    %22 = arith.addf %19, %21 : vector<56x4xf32>
    %c0_17 = arith.constant 0 : index
    %c0_18 = arith.constant 0 : index
    %23 = vector.load %arg8[%c0_17, %c0_18] : memref<56x4xf32, #tpu.memory_space<vmem>>, vector<56x4xf32>
    tpu.vector_store %arg8[%c0_17, %c0_18], %22 {strides = array<i32>} : memref<56x4xf32, #tpu.memory_space<vmem>>, vector<56x4xf32>,
    return
  }
  func.func @transform_0(%arg0: i32) -> (i32, i32) {
    %c0_i32 = arith.constant 0 : i32
    %c0_i32_0 = arith.constant 0 : i32
    return %arg0, %c0_i32 : i32, i32
  }
  func.func @transform_1(%arg0: i32) -> (i32, i32) {
    %c0_i32 = arith.constant 0 : i32
    %c0_i32_0 = arith.constant 0 : i32
    %c0_i32_1 = arith.constant 0 : i32
    return %c0_i32, %c0_i32_0 : i32, i32
  }
  func.func @transform_2(%arg0: i32) -> (i32, i32) {
    %c0_i32 = arith.constant 0 : i32
    %c0_i32_0 = arith.constant 0 : i32
    %c0_i32_1 = arith.constant 0 : i32
    return %c0_i32, %c0_i32_0 : i32, i32
  }
  func.func @transform_3(%arg0: i32) -> (i32, i32) {
    %c0_i32 = arith.constant 0 : i32
    %c0_i32_0 = arith.constant 0 : i32
    %c0_i32_1 = arith.constant 0 : i32
    return %c0_i32, %c0_i32_0 : i32, i32
  }
  func.func @transform_4(%arg0: i32) -> (i32, i32) {
    %c0_i32 = arith.constant 0 : i32
    %c0_i32_0 = arith.constant 0 : i32
    %c0_i32_1 = arith.constant 0 : i32
    return %c0_i32, %c0_i32_0 : i32, i32
  }
  func.func @transform_5(%arg0: i32) -> (i32, i32) {
    %c0_i32 = arith.constant 0 : i32
    %c0_i32_0 = arith.constant 0 : i32
    %c0_i32_1 = arith.constant 0 : i32
    return %c0_i32, %c0_i32_0 : i32, i32
  }
  func.func @transform_6(%arg0: i32) -> (i32, i32) {
    %c0_i32 = arith.constant 0 : i32
    %c0_i32_0 = arith.constant 0 : i32
    %c0_i32_1 = arith.constant 0 : i32
    return %c0_i32, %c0_i32_0 : i32, i32
  }
  func.func @transform_7(%arg0: i32) -> (i32, i32) {
    %c0_i32 = arith.constant 0 : i32
    %c0_i32_0 = arith.constant 0 : i32
    return %arg0, %c0_i32 : i32, i32
  }
}

</mosaic_0001>

<llo_original>
// kernel: _dqn_forward_impl.1
$region0: #{_dqn_forward_impl.1}
  #allocation0 [shape = 'u32[]', space=smem, size = 0x4, offset = 0x4, fixed_abs, tag = 'smem constant byte address 0x4 - core index']
  #allocation1 [shape = 'u32[144,128]{1,0:T(1,128)}', space=vmem, size = 0x12000, scoped, tag = 'internal scratch']
  %s0 = inlined_call_operand.vmem [shape: f32[56,16], index: 0, kind: input, shape index: {}]
  %s1 = inlined_call_operand.vmem [shape: bf16[16,128], index: 1, kind: input, shape index: {}]
  %s2 = inlined_call_operand.vmem [shape: f32[1,128], index: 2, kind: input, shape index: {}]
  %s3 = inlined_call_operand.vmem [shape: bf16[128,128], index: 3, kind: input, shape index: {}]
  %s4 = inlined_call_operand.vmem [shape: f32[1,128], index: 4, kind: input, shape index: {}]
  %s5 = inlined_call_operand.vmem [shape: bf16[128,4], index: 5, kind: input, shape index: {}]
  %s6 = inlined_call_operand.vmem [shape: f32[1,4], index: 6, kind: input, shape index: {}]
  %s7 = inlined_call_operand.vmem [shape: f32[56,4], index: 7, kind: output, shape index: {}]
  %s8 = sld [smem:[#allocation0]]
  $region38: #{_dqn_forward_impl.1} parent=0
    _
  %s10 = ssub.s32 1, %s8
  %s11 = scalar_select 0, %s10, %s8
  // Predicated region
  $region2: #{_dqn_forward_impl.1} parent=0 // pred_check
    _
  $region3: #{_dqn_forward_impl.1} parent=0 // pred_check_branch
    %13 = sbr.rel (0) target = $region5
  $region4: #{_dqn_forward_impl.1} parent=0 // pred_region
    _
  $region5: #{_dqn_forward_impl.1} parent=0 // pred_fallthru
    _
  // Predicated region
  $region6: #{_dqn_forward_impl.1} parent=0 // pred_check
    _
  $region7: #{_dqn_forward_impl.1} parent=0 // pred_check_branch
    %15 = sbr.rel (0) target = $region9
  $region8: #{_dqn_forward_impl.1} parent=0 // pred_region
    _
  $region9: #{_dqn_forward_impl.1} parent=0 // pred_fallthru
    _
  // Predicated region
  $region10: #{_dqn_forward_impl.1} parent=0 // pred_check
    _
  $region11: #{_dqn_forward_impl.1} parent=0 // pred_check_branch
    %17 = sbr.rel (0) target = $region13
  $region12: #{_dqn_forward_impl.1} parent=0 // pred_region
    _
  $region13: #{_dqn_forward_impl.1} parent=0 // pred_fallthru
    _
  // Predicated region
  $region14: #{_dqn_forward_impl.1} parent=0 // pred_check
    _
  $region15: #{_dqn_forward_impl.1} parent=0 // pred_check_branch
    %19 = sbr.rel (0) target = $region17
  $region16: #{_dqn_forward_impl.1} parent=0 // pred_region
    _
  $region17: #{_dqn_forward_impl.1} parent=0 // pred_fallthru
    _
  // Predicated region
  $region18: #{_dqn_forward_impl.1} parent=0 // pred_check
    _
  $region19: #{_dqn_forward_impl.1} parent=0 // pred_check_branch
    %21 = sbr.rel (0) target = $region21
  $region20: #{_dqn_forward_impl.1} parent=0 // pred_region
    _
  $region21: #{_dqn_forward_impl.1} parent=0 // pred_fallthru
    _
  // Predicated region
  $region22: #{_dqn_forward_impl.1} parent=0 // pred_check
    _
  $region23: #{_dqn_forward_impl.1} parent=0 // pred_check_branch
    %23 = sbr.rel (0) target = $region25
  $region24: #{_dqn_forward_impl.1} parent=0 // pred_region
    _
  $region25: #{_dqn_forward_impl.1} parent=0 // pred_fallthru
    _
  // Predicated region
  $region26: #{_dqn_forward_impl.1} parent=0 // pred_check
    _
  $region27: #{_dqn_forward_impl.1} parent=0 // pred_check_branch
    %25 = sbr.rel (0) target = $region29
  $region28: #{_dqn_forward_impl.1} parent=0 // pred_region
    _
  $region29: #{_dqn_forward_impl.1} parent=0 // pred_fallthru
    _
  %v27 = vld [vmem:[%s0] sm:$0xff]
  %v28 = vld [vmem:[%s0 + $0x8] sm:$0xff]
  %v29 = vld [vmem:[%s0 + $0x10] sm:$0xff]
  %v30 = vld [vmem:[%s0 + $0x18] sm:$0xff]
  %v31 = vld [vmem:[%s0 + $0x20] sm:$0xff]
  %v32 = vld [vmem:[%s0 + $0x28] sm:$0xff]
  %v33 = vld [vmem:[%s0 + $0x30] sm:$0xff]
  %v34 = vpack.c.bf16 %v28, %v27
  %v35 = vpack.c.bf16 %v30, %v29
  %v36 = vpack.c.bf16 %v32, %v31
  %v37 = vpack.c.bf16 %v33, %v33
  %v38 = vld [vmem:[%s1] sm:$0xf]
  %v39 = vld [vmem:[%s1 + $0x4] sm:$0xf]
  %v40 = vld [vmem:[%s2] sm:$0x1]
  %v42 = vlaneseq
  %v43 = vshrl.u32 %v42, 7
  %v44 = vsub.s32 0, %v43
  %v45 = vrot.slane %v40, %v44
  %v49 = vunpack.c.l.b16 %v38
  %v50 = vunpack.c.l.b16 %v39
  %v51 = vpack.c.b16 %v50, %v49
  %vm53 = vcmask 130048
  %v55 = vsel %vm53, %v34, 0
  %v58 = vsel %vm53, %v35, 0
  %v61 = vsel %vm53, %v36, 0
  %v64 = vsel %vm53, %v37, 0
  %66 = vmatprep.subr.bf16.mxu0 0
  %67 = vmatpush1.bf16.msra.mxu0 %v51
  %68 = vmatprep.subr.bf16.mxu0 0
  %69 = vmatpush1.bf16.msra.mxu0 0
  %70 = vmatprep.subr.bf16.mxu0 0
  %71 = vmatpush1.bf16.msra.mxu0 0
  %72 = vmatprep.subr.bf16.mxu0 0
  %73 = vmatpush1.bf16.msra.mxu0 0
  %74 = vmatprep.subr.bf16.mxu0 0
  %75 = vmatpush1.bf16.msra.mxu0 0
  %76 = vmatprep.subr.bf16.mxu0 0
  %77 = vmatpush1.bf16.msra.mxu0 0
  %78 = vmatprep.subr.bf16.mxu0 0
  %79 = vmatpush1.bf16.msra.mxu0 0
  %80 = vmatprep.subr.bf16.mxu0 0
  %81 = vmatpush1.bf16.msra.mxu0 0
  %82 = vmatprep.subr.bf16.mxu0 0
  %83 = vmatpush1.bf16.msra.mxu0 0
  %84 = vmatprep.subr.bf16.mxu0 0
  %85 = vmatpush1.bf16.msra.mxu0 0
  %86 = vmatprep.subr.bf16.mxu0 0
  %87 = vmatpush1.bf16.msra.mxu0 0
  %88 = vmatprep.subr.bf16.mxu0 0
  %89 = vmatpush1.bf16.msra.mxu0 0
  %90 = vmatprep.subr.bf16.mxu0 0
  %91 = vmatpush1.bf16.msra.mxu0 0
  %92 = vmatprep.subr.bf16.mxu0 0
  %93 = vmatpush1.bf16.msra.mxu0 0
  %94 = vmatprep.subr.bf16.mxu0 0
  %95 = vmatpush1.bf16.msra.mxu0 0
  %96 = vmatprep.subr.bf16.mxu0 0
  %97 = vmatpush1.bf16.msra.mxu0 0
  %98 = vmatprep.mubr.bf16.mxu0 0
  %99 = vmatmul.mubr.bf16.gmra.mrb[0].mxu0 %v55
  %v100 = vpop.f32.mrb[0].mxu0
  %v101 = vadd.f32 %v45, %v100
  %v102 = vpop.f32.mrb[0].mxu0
  %v103 = vpop.f32.mrb[0].mxu0
  %v104 = vadd.f32 %v45, %v103
  %v105 = vpop.f32.mrb[0].mxu0
  %106 = vmatprep.mubr.bf16.mxu0 0
  %107 = vmatmul.mubr.bf16.gmra.mrb[0].mxu0 %v58
  %v108 = vpop.f32.mrb[0].mxu0
  %v109 = vadd.f32 %v45, %v108
  %v110 = vpop.f32.mrb[0].mxu0
  %v111 = vpop.f32.mrb[0].mxu0
  %v112 = vadd.f32 %v45, %v111
  %v113 = vpop.f32.mrb[0].mxu0
  %114 = vmatprep.mubr.bf16.mxu0 0
  %115 = vmatmul.mubr.bf16.gmra.mrb[0].mxu0 %v61
  %v116 = vpop.f32.mrb[0].mxu0
  %v117 = vadd.f32 %v45, %v116
  %v118 = vpop.f32.mrb[0].mxu0
  %v119 = vpop.f32.mrb[0].mxu0
  %v120 = vadd.f32 %v45, %v119
  %v121 = vpop.f32.mrb[0].mxu0
  %122 = vmatprep.mubr.bf16.mxu0 0
  %123 = vmatmul.mubr.bf16.gmra.mrb[0].mxu0 %v64
  %v124 = vpop.f32.mrb[0].mxu0
  %v125 = vadd.f32 %v45, %v124
  %v126 = vpop.f32.mrb[0].mxu0
  %v127 = vpop.f32.mrb[0].mxu0
  %v128 = vpop.f32.mrb[0].mxu0
  %129 = vdwg.mxu0
  %v130 = vmax.f32 %v101, 0.0
  %v131 = vmax.f32 %v104, 0.0
  %v132 = vmax.f32 %v109, 0.0
  %v133 = vmax.f32 %v112, 0.0
  %v134 = vmax.f32 %v117, 0.0
  %v135 = vmax.f32 %v120, 0.0
  %v136 = vmax.f32 %v125, 0.0
  %v137 = vpack.c.bf16 %v131, %v130
  %v138 = vpack.c.bf16 %v133, %v132
  %v139 = vpack.c.bf16 %v135, %v134
  %v140 = vpack.c.bf16 %v136, %v136
  %v141 = vld [vmem:[%s3] sm:$0xf]
  %v142 = vld [vmem:[%s3 + $0x4] sm:$0xf]
  %v143 = vld [vmem:[%s3 + $0x8] sm:$0xf]
  %v144 = vld [vmem:[%s3 + $0xc] sm:$0xf]
  %v145 = vld [vmem:[%s3 + $0x10] sm:$0xf]
  %v146 = vld [vmem:[%s3 + $0x14] sm:$0xf]
  %v147 = vld [vmem:[%s3 + $0x18] sm:$0xf]
  %v148 = vld [vmem:[%s3 + $0x1c] sm:$0xf]
  %v149 = vld [vmem:[%s3 + $0x20] sm:$0xf]
  %v150 = vld [vmem:[%s3 + $0x24] sm:$0xf]
  %v151 = vld [vmem:[%s3 + $0x28] sm:$0xf]
  %v152 = vld [vmem:[%s3 + $0x2c] sm:$0xf]
  %v153 = vld [vmem:[%s3 + $0x30] sm:$0xf]
  %v154 = vld [vmem:[%s3 + $0x34] sm:$0xf]
  %v155 = vld [vmem:[%s3 + $0x38] sm:$0xf]
  %v156 = vld [vmem:[%s3 + $0x3c] sm:$0xf]
  %v157 = vld [vmem:[%s4] sm:$0x1]
  %v159 = vlaneseq
  %v160 = vshrl.u32 %v159, 7
  %v161 = vsub.s32 0, %v160
  %v162 = vrot.slane %v157, %v161
  %v180 = vunpack.c.l.b16 %v141
  %v181 = vunpack.c.l.b16 %v142
  %v182 = vunpack.c.l.b16 %v143
  %v183 = vunpack.c.l.b16 %v144
  %v184 = vunpack.c.l.b16 %v145
  %v185 = vunpack.c.l.b16 %v146
  %v186 = vunpack.c.l.b16 %v147
  %v187 = vunpack.c.l.b16 %v148
  %v188 = vunpack.c.l.b16 %v149
  %v189 = vunpack.c.l.b16 %v150
  %v190 = vunpack.c.l.b16 %v151
  %v191 = vunpack.c.l.b16 %v152
  %v192 = vunpack.c.l.b16 %v153
  %v193 = vunpack.c.l.b16 %v154
  %v194 = vunpack.c.l.b16 %v155
  %v195 = vunpack.c.l.b16 %v156
  %v196 = vpack.c.b16 %v181, %v180
  %v197 = vpack.c.b16 %v183, %v182
  %v198 = vpack.c.b16 %v185, %v184
  %v199 = vpack.c.b16 %v187, %v186
  %v200 = vpack.c.b16 %v189, %v188
  %v201 = vpack.c.b16 %v191, %v190
  %v202 = vpack.c.b16 %v193, %v192
  %v203 = vpack.c.b16 %v195, %v194
  %212 = vmatprep.subr.bf16.mxu0 0
  %213 = vmatpush1.bf16.msra.mxu0 %v196
  %214 = vmatprep.subr.bf16.mxu0 0
  %215 = vmatpush1.bf16.msra.mxu0 %v197
  %216 = vmatprep.subr.bf16.mxu0 0
  %217 = vmatpush1.bf16.msra.mxu0 %v198
  %218 = vmatprep.subr.bf16.mxu0 0
  %219 = vmatpush1.bf16.msra.mxu0 %v199
  %220 = vmatprep.subr.bf16.mxu0 0
  %221 = vmatpush1.bf16.msra.mxu0 %v200
  %222 = vmatprep.subr.bf16.mxu0 0
  %223 = vmatpush1.bf16.msra.mxu0 %v201
  %224 = vmatprep.subr.bf16.mxu0 0
  %225 = vmatpush1.bf16.msra.mxu0 %v202
  %226 = vmatprep.subr.bf16.mxu0 0
  %227 = vmatpush1.bf16.msra.mxu0 %v203
  %228 = vmatprep.subr.bf16.mxu0 0
  %229 = vmatpush1.bf16.msra.mxu0 0
  %230 = vmatprep.subr.bf16.mxu0 0
  %231 = vmatpush1.bf16.msra.mxu0 0
  %232 = vmatprep.subr.bf16.mxu0 0
  %233 = vmatpush1.bf16.msra.mxu0 0
  %234 = vmatprep.subr.bf16.mxu0 0
  %235 = vmatpush1.bf16.msra.mxu0 0
  %236 = vmatprep.subr.bf16.mxu0 0
  %237 = vmatpush1.bf16.msra.mxu0 0
  %238 = vmatprep.subr.bf16.mxu0 0
  %239 = vmatpush1.bf16.msra.mxu0 0
  %240 = vmatprep.subr.bf16.mxu0 0
  %241 = vmatpush1.bf16.msra.mxu0 0
  %242 = vmatprep.subr.bf16.mxu0 0
  %243 = vmatpush1.bf16.msra.mxu0 0
  %244 = vmatprep.mubr.bf16.mxu0 0
  %245 = vmatmul.mubr.bf16.gmra.mrb[0].mxu0 %v137
  %v246 = vpop.f32.mrb[0].mxu0
  %v247 = vadd.f32 %v162, %v246
  %v248 = vpop.f32.mrb[0].mxu0
  %v249 = vpop.f32.mrb[0].mxu0
  %v250 = vadd.f32 %v162, %v249
  %v251 = vpop.f32.mrb[0].mxu0
  %252 = vmatprep.mubr.bf16.mxu0 0
  %253 = vmatmul.mubr.bf16.gmra.mrb[0].mxu0 %v138
  %v254 = vpop.f32.mrb[0].mxu0
  %v255 = vadd.f32 %v162, %v254
  %v256 = vpop.f32.mrb[0].mxu0
  %v257 = vpop.f32.mrb[0].mxu0
  %v258 = vadd.f32 %v162, %v257
  %v259 = vpop.f32.mrb[0].mxu0
  %260 = vmatprep.mubr.bf16.mxu0 0
  %261 = vmatmul.mubr.bf16.gmra.mrb[0].mxu0 %v139
  %v262 = vpop.f32.mrb[0].mxu0
  %v263 = vadd.f32 %v162, %v262
  %v264 = vpop.f32.mrb[0].mxu0
  %v265 = vpop.f32.mrb[0].mxu0
  %v266 = vadd.f32 %v162, %v265
  %v267 = vpop.f32.mrb[0].mxu0
  %268 = vmatprep.mubr.bf16.mxu0 0
  %269 = vmatmul.mubr.bf16.gmra.mrb[0].mxu0 %v140
  %v270 = vpop.f32.mrb[0].mxu0
  %v271 = vadd.f32 %v162, %v270
  %v272 = vpop.f32.mrb[0].mxu0
  %v273 = vpop.f32.mrb[0].mxu0
  %v274 = vpop.f32.mrb[0].mxu0
  %275 = vdwg.mxu0
  %v276 = vmax.f32 %v247, 0.0
  %v277 = vmax.f32 %v250, 0.0
  %v278 = vmax.f32 %v255, 0.0
  %v279 = vmax.f32 %v258, 0.0
  %v280 = vmax.f32 %v263, 0.0
  %v281 = vmax.f32 %v266, 0.0
  %v282 = vmax.f32 %v271, 0.0
  %v283 = vpack.c.bf16 %v277, %v276
  %v284 = vpack.c.bf16 %v279, %v278
  %v285 = vpack.c.bf16 %v281, %v280
  %v286 = vpack.c.bf16 %v282, %v282
  %v287 = vld [vmem:[%s5] sm:$0xf]
  %v288 = vld [vmem:[%s5 + $0x4] sm:$0xf]
  %v289 = vld [vmem:[%s5 + $0x8] sm:$0xf]
  %v290 = vld [vmem:[%s5 + $0xc] sm:$0xf]
  %v291 = vld [vmem:[%s5 + $0x10] sm:$0xf]
  %v292 = vld [vmem:[%s5 + $0x14] sm:$0xf]
  %v293 = vld [vmem:[%s5 + $0x18] sm:$0xf]
  %v294 = vld [vmem:[%s5 + $0x1c] sm:$0xf]
  %v295 = vld [vmem:[%s5 + $0x20] sm:$0xf]
  %v296 = vld [vmem:[%s5 + $0x24] sm:$0xf]
  %v297 = vld [vmem:[%s5 + $0x28] sm:$0xf]
  %v298 = vld [vmem:[%s5 + $0x2c] sm:$0xf]
  %v299 = vld [vmem:[%s5 + $0x30] sm:$0xf]
  %v300 = vld [vmem:[%s5 + $0x34] sm:$0xf]
  %v301 = vld [vmem:[%s5 + $0x38] sm:$0xf]
  %v302 = vld [vmem:[%s5 + $0x3c] sm:$0xf]
  %v303 = vld [vmem:[%s6] sm:$0x1]
  %v305 = vlaneseq
  %v306 = vshrl.u32 %v305, 7
  %v307 = vsub.s32 0, %v306
  %v308 = vrot.slane %v303, %v307
  %v326 = vunpack.c.l.b16 %v287
  %v327 = vunpack.c.l.b16 %v288
  %v328 = vunpack.c.l.b16 %v289
  %v329 = vunpack.c.l.b16 %v290
  %v330 = vunpack.c.l.b16 %v291
  %v331 = vunpack.c.l.b16 %v292
  %v332 = vunpack.c.l.b16 %v293
  %v333 = vunpack.c.l.b16 %v294
  %v334 = vunpack.c.l.b16 %v295
  %v335 = vunpack.c.l.b16 %v296
  %v336 = vunpack.c.l.b16 %v297
  %v337 = vunpack.c.l.b16 %v298
  %v338 = vunpack.c.l.b16 %v299
  %v339 = vunpack.c.l.b16 %v300
  %v340 = vunpack.c.l.b16 %v301
  %v341 = vunpack.c.l.b16 %v302
  %v342 = vpack.c.b16 %v327, %v326
  %v343 = vpack.c.b16 %v329, %v328
  %v344 = vpack.c.b16 %v331, %v330
  %v345 = vpack.c.b16 %v333, %v332
  %v346 = vpack.c.b16 %v335, %v334
  %v347 = vpack.c.b16 %v337, %v336
  %v348 = vpack.c.b16 %v339, %v338
  %v349 = vpack.c.b16 %v341, %v340
  %358 = vmatprep.subr.bf16.mxu0 0
  %359 = vmatpush1.bf16.msra.mxu0 %v342
  %360 = vmatprep.subr.bf16.mxu0 0
  %361 = vmatpush1.bf16.msra.mxu0 %v343
  %362 = vmatprep.subr.bf16.mxu0 0
  %363 = vmatpush1.bf16.msra.mxu0 %v344
  %364 = vmatprep.subr.bf16.mxu0 0
  %365 = vmatpush1.bf16.msra.mxu0 %v345
  %366 = vmatprep.subr.bf16.mxu0 0
  %367 = vmatpush1.bf16.msra.mxu0 %v346
  %368 = vmatprep.subr.bf16.mxu0 0
  %369 = vmatpush1.bf16.msra.mxu0 %v347
  %370 = vmatprep.subr.bf16.mxu0 0
  %371 = vmatpush1.bf16.msra.mxu0 %v348
  %372 = vmatprep.subr.bf16.mxu0 0
  %373 = vmatpush1.bf16.msra.mxu0 %v349
  %374 = vmatprep.subr.bf16.mxu0 0
  %375 = vmatpush1.bf16.msra.mxu0 0
  %376 = vmatprep.subr.bf16.mxu0 0
  %377 = vmatpush1.bf16.msra.mxu0 0
  %378 = vmatprep.subr.bf16.mxu0 0
  %379 = vmatpush1.bf16.msra.mxu0 0
  %380 = vmatprep.subr.bf16.mxu0 0
  %381 = vmatpush1.bf16.msra.mxu0 0
  %382 = vmatprep.subr.bf16.mxu0 0
  %383 = vmatpush1.bf16.msra.mxu0 0
  %384 = vmatprep.subr.bf16.mxu0 0
  %385 = vmatpush1.bf16.msra.mxu0 0
  %386 = vmatprep.subr.bf16.mxu0 0
  %387 = vmatpush1.bf16.msra.mxu0 0
  %388 = vmatprep.subr.bf16.mxu0 0
  %389 = vmatpush1.bf16.msra.mxu0 0
  %390 = vmatprep.mubr.bf16.mxu0 0
  %391 = vmatmul.mubr.bf16.gmra.mrb[0].mxu0 %v283
  %v392 = vpop.f32.mrb[0].mxu0
  %v393 = vadd.f32 %v308, %v392
  %v394 = vpop.f32.mrb[0].mxu0
  %v395 = vpop.f32.mrb[0].mxu0
  %v396 = vadd.f32 %v308, %v395
  %v397 = vpop.f32.mrb[0].mxu0
  %398 = vmatprep.mubr.bf16.mxu0 0
  %399 = vmatmul.mubr.bf16.gmra.mrb[0].mxu0 %v284
  %v400 = vpop.f32.mrb[0].mxu0
  %v401 = vadd.f32 %v308, %v400
  %v402 = vpop.f32.mrb[0].mxu0
  %v403 = vpop.f32.mrb[0].mxu0
  %v404 = vadd.f32 %v308, %v403
  %v405 = vpop.f32.mrb[0].mxu0
  %406 = vmatprep.mubr.bf16.mxu0 0
  %407 = vmatmul.mubr.bf16.gmra.mrb[0].mxu0 %v285
  %v408 = vpop.f32.mrb[0].mxu0
  %v409 = vadd.f32 %v308, %v408
  %v410 = vpop.f32.mrb[0].mxu0
  %v411 = vpop.f32.mrb[0].mxu0
  %v412 = vadd.f32 %v308, %v411
  %v413 = vpop.f32.mrb[0].mxu0
  %414 = vmatprep.mubr.bf16.mxu0 0
  %415 = vmatmul.mubr.bf16.gmra.mrb[0].mxu0 %v286
  %v416 = vpop.f32.mrb[0].mxu0
  %v417 = vadd.f32 %v308, %v416
  %v418 = vpop.f32.mrb[0].mxu0
  %v419 = vpop.f32.mrb[0].mxu0
  %v420 = vpop.f32.mrb[0].mxu0
  %421 = vdwg.mxu0
  %vm422 = vcmask 31744
  %423 = vst.msk [vmem:[%s7] sm:$0xff] %vm422, %v393
  %424 = vst.msk [vmem:[%s7 + $0x8] sm:$0xff] %vm422, %v396
  %425 = vst.msk [vmem:[%s7 + $0x10] sm:$0xff] %vm422, %v401
  %426 = vst.msk [vmem:[%s7 + $0x18] sm:$0xff] %vm422, %v404
  %427 = vst.msk [vmem:[%s7 + $0x20] sm:$0xff] %vm422, %v409
  %428 = vst.msk [vmem:[%s7 + $0x28] sm:$0xff] %vm422, %v412
  %429 = vst.msk [vmem:[%s7 + $0x30] sm:$0xff] %vm422, %v417
  // Predicated region
  $region30: #{_dqn_forward_impl.1} parent=0 // pred_check
    _
  $region31: #{_dqn_forward_impl.1} parent=0 // pred_check_branch
    %431 = sbr.rel (0) target = $region33
  $region32: #{_dqn_forward_impl.1} parent=0 // pred_region
    _
  $region33: #{_dqn_forward_impl.1} parent=0 // pred_fallthru
    _
  // Predicated region
  $region34: #{_dqn_forward_impl.1} parent=0 // pred_check
    _
  $region35: #{_dqn_forward_impl.1} parent=0 // pred_check_branch
    %433 = sbr.rel (0) target = $region37
  $region36: #{_dqn_forward_impl.1} parent=0 // pred_region
    _
  $region37: #{_dqn_forward_impl.1} parent=0 // pred_fallthru
    _

</llo_original>
